<compile_context>
chip_gen: v5e
topology: v5e:2x2
jax: 0.10.0
libtpu: 0.0.40
codegen_flags: <defaults>
</compile_context>

<pallas_src>
import functools

import jax
import jax.numpy as jnp
from jax.experimental import pallas as pl
from jax.experimental.pallas import tpu as pltpu


_TARGET_BLOCK_BYTES = 4 * 1024 * 1024            # ~4 MiB blocks: near HBM roofline
_TARGET_BLOCK_BYTES_BIG_VMEM = 8 * 1024 * 1024   # v5e/v6e (128 MiB VMEM) can afford more
_MAX_POOL_EXPAND_BYTES = 16 * 1024 * 1024        # cap for the block-diag pool/expand mats
_HEADROOM_BYTES = 2 * 1024 * 1024


def _vmem_capacity_bytes():
    """Physical VMEM per TensorCore; conservative fallback if the query fails."""
    try:
        cap = getattr(pltpu.get_tpu_info(), "vmem_capacity_bytes", None)
        if cap:
            return int(cap)
    except Exception:
        pass
    return 64 * 1024 * 1024                      # v7x has the smallest VMEM (64 MiB)


def _se_kernel_nchw(x_ref, w1t_ref, w2t_ref, o_ref):
    """Block layout (B, C, HW): spatial (HW) on the lane axis.

    x streams through vregs exactly twice (lane-reduce pool + scale multiply),
    the structural minimum for y = x * f(mean(x)); no f32 copies of x and no
    in-kernel reshapes/relayouts (v7x is vld-slot bound for this pattern, so
    any extra VMEM traffic costs throughput there).
    """
    x = x_ref[...]                                        # native dtype
    inv_hw = 1.0 / x.shape[-1]
    # squeeze: spatial mean with f32 accumulation (XLU reduce, hidden under DMA)
    s = jnp.sum(x, axis=-1, dtype=jnp.float32) * inv_hw                 # (B, C)
    # excite: 1x1 conv -> SiLU -> 1x1 conv -> sigmoid on the pooled vector
    h = jnp.dot(s, w1t_ref[...], preferred_element_type=jnp.float32)    # (B, Cr)
    h = h * jax.nn.sigmoid(h)                                           # SiLU
    g = jax.nn.sigmoid(
        jnp.dot(h, w2t_ref[...], preferred_element_type=jnp.float32))   # (B, C)
    # scale: multiply in native dtype, gate broadcast along the lane axis
    o_ref[...] = (x * g.astype(x.dtype)[:, :, None]).astype(o_ref.dtype)


def _se_kernel_flat(x_ref, pool_ref, w1t_ref, w2t_ref, expand_ref, o_ref, *, inv_hw):
    """Block layout (B, C*HW): fully lane-dense flattened view for small HW.

    Per-channel pool and gate broadcast go through small 0/1 block-diagonal
    matrices on the MXU, so x never takes a lane-sparse layout and no in-kernel
    relayout is needed; loads, the scale multiply and stores are unmasked.
    """
    x = x_ref[...]                                        # (B, C*HW), native dtype
    # squeeze: per-channel spatial sum = x @ block_diag(ones(HW, 1)); f32 accumulate
    s = jnp.dot(x, pool_ref[...], preferred_element_type=jnp.float32) * inv_hw  # (B, C)
    h = jnp.dot(s, w1t_ref[...], preferred_element_type=jnp.float32)            # (B, Cr)
    h = h * jax.nn.sigmoid(h)                                                   # SiLU
    g = jax.nn.sigmoid(
        jnp.dot(h, w2t_ref[...], preferred_element_type=jnp.float32))           # (B, C)
    # expand: g @ block_diag(ones(1, HW)) broadcasts each channel's gate across
    # its HW slots directly in x's lane-dense layout.
    g_full = jnp.dot(g.astype(x.dtype), expand_ref[...],
                     preferred_element_type=x.dtype)                            # (B, C*HW)
    o_ref[...] = (x * g_full).astype(o_ref.dtype)


def se_block_ref(x, w1, w2):
    """Pure-JAX reference matching the PyTorch SEBlock semantics."""
    s = jnp.mean(x, axis=(2, 3))                   # (N, C)
    h = s @ w1.T                                   # (N, Cr)
    h = h * jax.nn.sigmoid(h)                      # SiLU
    g = jax.nn.sigmoid(h @ w2.T)                   # (N, C)
    return x * g[:, :, None, None]


def _pick_batch_tile(n, per_sample_bytes, block_budget_bytes, target_bytes,
                     sublane_align):
    """Batch fold per block: near the block-size target, >= min(N,4) grid steps
    when N > 1 (megacore / pipeline overlap on v7x), within the VMEM budget
    (in + out blocks are double-buffered => 4x block bytes)."""
    budget_per_block = max(per_sample_bytes, block_budget_bytes // 4)
    b = max(1, min(target_bytes, budget_per_block) // max(per_sample_bytes, 1))
    if n > 1:
        b = min(b, max(1, n // min(n, 4)))
    b = min(b, n)
    if sublane_align:
        # 2-D flattened blocks: second-to-last dim must be a multiple of 8 or
        # the full batch (sublane tiling constraint).
        b = n if n < 8 else max(8, (b // 8) * 8)
    return b


def se_block(x_nchw, w1, w2):
    """x_nchw: (N, C, H, W); w1: (C//r, C) conv1 weight; w2: (C, C//r) conv2 weight."""
    n, c, h, w = x_nchw.shape
    cr = w1.shape[0]
    hw = h * w
    dtype = x_nchw.dtype
    itemsize = dtype.itemsize

    vmem_cap = _vmem_capacity_bytes()
    safe_cap = (vmem_cap * 3) // 4               # headroom for compiler scratch
    target_block = (_TARGET_BLOCK_BYTES_BIG_VMEM if vmem_cap > 96 * 1024 * 1024
                    else _TARGET_BLOCK_BYTES)

    # Pre-transpose the tiny 1x1-conv weights; gate math runs in f32.
    w1t = jnp.transpose(w1).astype(jnp.float32)  # (C, Cr)
    w2t = jnp.transpose(w2).astype(jnp.float32)  # (Cr, C)
    weights_bytes = 2 * c * cr * 4

    per_sample_bytes = c * hw * itemsize

    # Lane-dense flattened path for small, non-128-aligned HW (7x7 / 14x14 SE
    # stages, regardless of C%128) — avoids the masked-vst store-slot ceiling
    # without any wrapper-side HBM transpose.
    lane_util = hw / float(-(-hw // 128) * 128)
    matrices_bytes = 2 * c * c * hw * itemsize
    use_flat = (hw % 128 != 0 and lane_util < 0.9
                and matrices_bytes <= _MAX_POOL_EXPAND_BYTES)

    if use_flat:
        const_bytes = weights_bytes + matrices_bytes
        budget = safe_cap - const_bytes - _HEADROOM_BYTES
        b_tile = _pick_batch_tile(n, per_sample_bytes, budget, target_block, True)
        if budget <= 0 or 4 * b_tile * per_sample_bytes > budget:
            use_flat = False

    if not use_flat:
        const_bytes = weights_bytes
        budget = safe_cap - const_bytes - _HEADROOM_BYTES
        b_tile = _pick_batch_tile(n, per_sample_bytes, budget, target_block, False)
        if 4 * b_tile * per_sample_bytes > budget:
            # TODO(synk): two-phase Pallas pipeline (HW-tiled pool pass, then
            # scale pass) for samples whose C*HW slab cannot be double-buffered
            # in VMEM; fall back to XLA for those rare shapes.
            return se_block_ref(x_nchw, w1, w2)

    # Ragged last block: OOB batch rows read garbage (rows are independent) and
    # are masked on writeback, so awkward N keeps near-target block sizes.
    num_blocks = pl.cdiv(n, b_tile)
    vmem_limit = int(min(safe_cap,
                         max(32 * 1024 * 1024,
                             4 * b_tile * per_sample_bytes + const_bytes
                             + _HEADROOM_BYTES)))
    compiler_params = pltpu.CompilerParams(
        dimension_semantics=("parallel",), vmem_limit_bytes=vmem_limit)

    if use_flat:
        k = c * hw
        x_flat = x_nchw.reshape(n, k)                                   # free (row-major)
        expand_mat = jnp.repeat(jnp.eye(c, dtype=dtype), hw, axis=1)    # (C, C*HW), 0/1
        pool_mat = expand_mat.T                                         # (C*HW, C), 0/1
        cost = pl.CostEstimate(
            flops=4 * n * k * c + 4 * n * c * cr + n * k,
            transcendentals=3 * n * (c + cr),
            bytes_accessed=2 * n * k * itemsize + matrices_bytes + weights_bytes)
        out = pl.pallas_call(
            functools.partial(_se_kernel_flat, inv_hw=1.0 / hw),
            out_shape=jax.ShapeDtypeStruct((n, k), dtype),
            grid_spec=pltpu.PrefetchScalarGridSpec(
                num_scalar_prefetch=0,
                grid=(num_blocks,),
                in_specs=[
                    pl.BlockSpec((b_tile, k), lambda i: (i, 0)),
                    pl.BlockSpec((k, c), lambda i: (0, 0)),
                    pl.BlockSpec((c, cr), lambda i: (0, 0)),
                    pl.BlockSpec((cr, c), lambda i: (0, 0)),
                    pl.BlockSpec((c, k), lambda i: (0, 0)),
                ],
                out_specs=pl.BlockSpec((b_tile, k), lambda i: (i, 0)),
            ),
            compiler_params=compiler_params,
            cost_estimate=cost,
        )(x_flat, pool_mat, w1t, w2t, expand_mat)
        return out.reshape(n, c, h, w)

    # Default NCHW path: (B, C, HW) blocks, spatial on the lane axis (lane-dense
    # whenever HW is a multiple of 128 or large).
    # TODO(synk): when HW is small AND the block-diagonal matrices would exceed
    # _MAX_POOL_EXPAND_BYTES (very wide 7x7 stages), this path runs with masked
    # lanes; a channel-tiled MXU pool would fix it without wrapper transposes.
    x3 = x_nchw.reshape(n, c, hw)                                       # free (row-major)
    cost = pl.CostEstimate(
        flops=3 * n * c * hw + 4 * n * c * cr,
        transcendentals=3 * n * (c + cr),
        bytes_accessed=2 * n * c * hw * itemsize + weights_bytes)
    out = pl.pallas_call(
        _se_kernel_nchw,
        out_shape=jax.ShapeDtypeStruct((n, c, hw), dtype),
        grid_spec=pltpu.PrefetchScalarGridSpec(
            num_scalar_prefetch=0,
            grid=(num_blocks,),
            in_specs=[
                pl.BlockSpec((b_tile, c, hw), lambda i: (i, 0, 0)),
                pl.BlockSpec((c, cr), lambda i: (0, 0)),
                pl.BlockSpec((cr, c), lambda i: (0, 0)),
            ],
            out_specs=pl.BlockSpec((b_tile, c, hw), lambda i: (i, 0, 0)),
        ),
        compiler_params=compiler_params,
        cost_estimate=cost,
    )(x3, w1t, w2t)
    return out.reshape(n, c, h, w)


if __name__ == "__main__":
    key = jax.random.PRNGKey(0)

    def run_case(case_key, n, c, h, w, reduction):
        cr = max(1, c // reduction)
        kx, k1, k2 = jax.random.split(case_key, 3)
        x = jax.random.normal(kx, (n, c, h, w), dtype=jnp.float32)
        w1 = jax.random.normal(k1, (cr, c), dtype=jnp.float32) * 0.1
        w2 = jax.random.normal(k2, (c, cr), dtype=jnp.float32) * 0.1
        y = se_block(x, w1, w2)
        jax.block_until_ready(y)
        y_ref = se_block_ref(x, w1, w2)
        assert y.shape == x.shape
        err = jnp.max(jnp.abs(y - y_ref))
        assert jnp.allclose(y, y_ref, atol=2e-5, rtol=2e-5), (
            f"mismatch (N={n},C={c},H={h},W={w}): max abs err {err}")

    keys = jax.random.split(key, 3)
    # case 1: HW % 128 == 0 -> (N, C, HW) path, spatial on lanes (lane-dense)
    run_case(keys[0], 2, 32, 16, 16, 16)
    # case 2: 7x7 SE stage, C=144 (neither HW nor C 128-aligned) ->
    #         lane-dense flattened path with MXU block-diagonal pool/expand
    run_case(keys[1], 2, 144, 7, 7, 16)
    # case 3: awkward batch (N=11) -> ragged last block via grid = cdiv
    run_case(keys[2], 11, 16, 16, 16, 4)

    print("KERNEL_OK")
</pallas_src>

<mosaic_0001>
module attributes {stable_mosaic.version = 11 : i64} {
  func.func @_se_kernel_nchw(%arg0: i32, %arg1: memref<1x32x256xf32, #tpu.memory_space<vmem>>, %arg2: memref<32x2xf32, #tpu.memory_space<vmem>>, %arg3: memref<2x32xf32, #tpu.memory_space<vmem>>, %arg4: memref<1x32x256xf32, #tpu.memory_space<vmem>>) attributes {dimension_semantics = [#tpu.dimension_semantics<parallel>], iteration_bounds = array<i64: 2>, scalar_prefetch = 0 : i64, scratch_operands = 0 : i64, tpu.core_type = #tpu.core_type<tc>, window_params = [{transform_indices = @transform_0, window_bounds = array<i64: 1, 32, 256>}, {pipeline_mode = #tpu.pipeline_mode<synchronous>, transform_indices = @transform_1, window_bounds = array<i64: 32, 2>}, {pipeline_mode = #tpu.pipeline_mode<synchronous>, transform_indices = @transform_2, window_bounds = array<i64: 2, 32>}, {transform_indices = @transform_3, window_bounds = array<i64: 1, 32, 256>}]} {
    %c0 = arith.constant 0 : index
    %c0_0 = arith.constant 0 : index
    %c0_1 = arith.constant 0 : index
    %0 = vector.load %arg1[%c0, %c0_0, %c0_1] : memref<1x32x256xf32, #tpu.memory_space<vmem>>, vector<1x32x256xf32>
    %cst = arith.constant dense<0.000000e+00> : vector<1x32xf32>
    %1 = vector.multi_reduction <add>, %0, %cst [2] : vector<1x32x256xf32> to vector<1x32xf32>
    %cst_2 = arith.constant 3.906250e-03 : f32
    %2 = vector.broadcast %cst_2 : f32 to vector<1x32xf32>
    %3 = arith.mulf %1, %2 : vector<1x32xf32>
    %c0_3 = arith.constant 0 : index
    %c0_4 = arith.constant 0 : index
    %4 = vector.load %arg2[%c0_3, %c0_4] : memref<32x2xf32, #tpu.memory_space<vmem>>, vector<32x2xf32>
    %cst_5 = arith.constant dense<0.000000e+00> : vector<1x2xf32>
    %5 = tpu.matmul %3, %4, %cst_5 {dimension_numbers = #tpu.dot_dimension_numbers<[1], [0], [0], [1], [0, 0, 1, 1], [], []>} : vector<1x32xf32>, vector<32x2xf32>, vector<1x2xf32> -> vector<1x2xf32>
    %6 = arith.negf %5 : vector<1x2xf32>
    %7 = math.exp %6 : vector<1x2xf32>
    %cst_6 = arith.constant 1.000000e+00 : f32
    %8 = vector.broadcast %cst_6 : f32 to vector<1x2xf32>
    %9 = arith.addf %8, %7 : vector<1x2xf32>
    %10 = arith.divf %8, %9 : vector<1x2xf32>
    %11 = arith.mulf %5, %10 : vector<1x2xf32>
    %c0_7 = arith.constant 0 : index
    %c0_8 = arith.constant 0 : index
    %12 = vector.load %arg3[%c0_7, %c0_8] : memref<2x32xf32, #tpu.memory_space<vmem>>, vector<2x32xf32>
    %cst_9 = arith.constant dense<0.000000e+00> : vector<1x32xf32>
    %13 = tpu.matmul %11, %12, %cst_9 {dimension_numbers = #tpu.dot_dimension_numbers<[1], [0], [0], [1], [0, 0, 1, 1], [], []>} : vector<1x2xf32>, vector<2x32xf32>, vector<1x32xf32> -> vector<1x32xf32>
    %14 = arith.negf %13 : vector<1x32xf32>
    %15 = math.exp %14 : vector<1x32xf32>
    %cst_10 = arith.constant 1.000000e+00 : f32
    %16 = vector.broadcast %cst_10 : f32 to vector<1x32xf32>
    %17 = arith.addf %16, %15 : vector<1x32xf32>
    %18 = arith.divf %16, %17 : vector<1x32xf32>
    %19 = vector.shape_cast %18 : vector<1x32xf32> to vector<1x32x1xf32>
    %20 = vector.broadcast %19 : vector<1x32x1xf32> to vector<1x32x256xf32>
    %21 = arith.mulf %0, %20 : vector<1x32x256xf32>
    %c0_11 = arith.constant 0 : index
    %c0_12 = arith.constant 0 : index
    %c0_13 = arith.constant 0 : index
    %22 = vector.load %arg4[%c0_11, %c0_12, %c0_13] : memref<1x32x256xf32, #tpu.memory_space<vmem>>, vector<1x32x256xf32>
    tpu.vector_store %arg4[%c0_11, %c0_12, %c0_13], %21 {strides = array<i32>} : memref<1x32x256xf32, #tpu.memory_space<vmem>>, vector<1x32x256xf32>,
    return
  }
  func.func @transform_0(%arg0: i32) -> (i32, i32, i32) {
    %c0_i32 = arith.constant 0 : i32
    %c0_i32_0 = arith.constant 0 : i32
    %c0_i32_1 = arith.constant 0 : i32
    return %arg0, %c0_i32, %c0_i32_0 : i32, i32, i32
  }
  func.func @transform_1(%arg0: i32) -> (i32, i32) {
    %c0_i32 = arith.constant 0 : i32
    %c0_i32_0 = arith.constant 0 : i32
    %c0_i32_1 = arith.constant 0 : i32
    return %c0_i32, %c0_i32_0 : i32, i32
  }
  func.func @transform_2(%arg0: i32) -> (i32, i32) {
    %c0_i32 = arith.constant 0 : i32
    %c0_i32_0 = arith.constant 0 : i32
    %c0_i32_1 = arith.constant 0 : i32
    return %c0_i32, %c0_i32_0 : i32, i32
  }
  func.func @transform_3(%arg0: i32) -> (i32, i32, i32) {
    %c0_i32 = arith.constant 0 : i32
    %c0_i32_0 = arith.constant 0 : i32
    %c0_i32_1 = arith.constant 0 : i32
    return %arg0, %c0_i32, %c0_i32_0 : i32, i32, i32
  }
}

</mosaic_0001>

<llo_original>
// kernel: tpu_custom_call.1
$region0: #{tpu_custom_call.1}
  #allocation0 [shape = 'u32[]', space=smem, size = 0x4, offset = 0x4, fixed_abs, tag = 'smem constant byte address 0x4 - core index']
  #allocation1 [shape = 'u32[72,128]{1,0:T(1,128)}', space=vmem, size = 0x9000, scoped, tag = 'internal scratch']
  %s0 = inlined_call_operand.hbm [shape: f32[2,32,256], index: 0, kind: input, shape index: {}]
  %s1 = inlined_call_operand.vmem [shape: f32[32,2], index: 1, kind: input, shape index: {}]
  %s2 = inlined_call_operand.vmem [shape: f32[2,32], index: 2, kind: input, shape index: {}]
  %s3 = inlined_call_operand.hbm [shape: f32[2,32,256], index: 3, kind: output, shape index: {}]
  %s4 = sld [smem:[#allocation0]]
  $region49: #{tpu_custom_call.1} parent=0
    _
  %s6 = ssub.s32 1, %s4
  %s7 = scalar_select 0, %s6, %s4
  $region1: #{tpu_custom_call.1} parent=0
    #allocation2 [shape = 'u8[65536]{0}', space=vmem, size = 0x10000, scoped, tag = 'input window, operand 0']
    #allocation3 [shape = 's32[2]{0}', space=sflag, size = 0x8, scoped, tag = 'scoped memory for tpu_custom_call.1']
    #allocation4 [shape = 's32[2]{0}', space=sflag, size = 0x8, scoped, tag = 'scoped memory for tpu_custom_call.1']
    #allocation5 [shape = 'u8[65536]{0}', space=vmem, size = 0x10000, scoped, tag = 'output window, operand 0']
    %8 = vsyncpa [#allocation3], 0
    %s9 = scalar_lea.sflag [#allocation3], 1
    %10 = vsyncpa %s9, 0
    %11 = vsyncpa [#allocation4], 0
    %s12 = scalar_lea.sflag [#allocation4], 1
    %13 = vsyncpa %s12, 0
    loop: start=0, step=1, limit=4
    $region2: #{tpu_custom_call.1} parent=1 // loop_pre_header
      _
    $region3: #{tpu_custom_call.1} parent=1 // loop_header
      %s15 = sphi 0, %s19
      %p16 = scmp.ge.s32.totalorder %s15, 4
      %s25 = sphi 0, %s27
      %s28 = sphi 0, %s25
      %s29 = sphi 0, %s28
      %s45 = sphi 0, %s29
      %s49 = sphi 0, %s49
      %s51 = sphi 0, %s49
      %s52 = sphi 0, %s51
      %s66 = sphi 0, %s52
      %s70 = sphi 0, %s70
      %s72 = sphi 0, %s70
      %s73 = sphi 0, %s72
      %s87 = sphi 0, %s73
      %s93 = sphi 0, %s95
      %s96 = sphi 0, %s93
      %s97 = sphi 0, %s96
      %s113 = sphi 0, %s97
    $region4: #{tpu_custom_call.1} parent=1 // loop_header_branch
      %18 = sbr.rel (%p16) target = $region8
    $region5: #{tpu_custom_call.1} parent=1 // loop_body
      %s20 = ssub.s32 %s15, 1
      %s21 = ssub.s32 %s15, 2
      %s22 = sadd.s32 %s15, 1
      %s23 = ssub.s32 %s15, %s22
      %p24 = scmp.eq.s32.totalorder %s23, 0
      %s26 = sadd.s32 %s25, 1
      %s27 = scalar_select %p24, %s25, %s26
      %p30 = pneg %p24
      %p31 = scmp.eq.s32.totalorder %s15, 1
      %p32 = por %p30, %p31
      %p33 = scmp.ne.s32.totalorder %s25, %s28
      %p34 = scmp.eq.s32.totalorder %s15, 0
      %p35 = por %p33, %p34
      %p36 = scmp.ne.s32.totalorder %s25, %s28
      %p37 = scmp.eq.s32.totalorder %s20, 1
      %p38 = por %p36, %p37
      %p39 = scmp.ne.s32.totalorder %s28, %s29
      %p40 = scmp.eq.s32.totalorder %s20, 0
      %p41 = por %p39, %p40
      %p42 = scmp.ne.s32.totalorder %s28, %s29
      %p43 = scmp.eq.s32.totalorder %s21, 1
      %p44 = por %p42, %p43
      %p46 = scmp.ne.s32.totalorder %s29, %s45
      %p47 = scmp.eq.s32.totalorder %s21, 0
      %p48 = por %p46, %p47
      %s50 = sadd.s32 %s49, 1
      %p53 = scmp.eq.s32.totalorder %s15, 1
      %p54 = scmp.ne.s32.totalorder %s49, %s51
      %p55 = scmp.eq.s32.totalorder %s15, 0
      %p56 = por %p54, %p55
      %p57 = scmp.ne.s32.totalorder %s49, %s51
      %p58 = scmp.eq.s32.totalorder %s20, 1
      %p59 = por %p57, %p58
      %p60 = scmp.ne.s32.totalorder %s51, %s52
      %p61 = scmp.eq.s32.totalorder %s20, 0
      %p62 = por %p60, %p61
      %p63 = scmp.ne.s32.totalorder %s51, %s52
      %p64 = scmp.eq.s32.totalorder %s21, 1
      %p65 = por %p63, %p64
      %p67 = scmp.ne.s32.totalorder %s52, %s66
      %p68 = scmp.eq.s32.totalorder %s21, 0
      %p69 = por %p67, %p68
      %s71 = sadd.s32 %s70, 1
      %p74 = scmp.eq.s32.totalorder %s15, 1
      %p75 = scmp.ne.s32.totalorder %s70, %s72
      %p76 = scmp.eq.s32.totalorder %s15, 0
      %p77 = por %p75, %p76
      %p78 = scmp.ne.s32.totalorder %s70, %s72
      %p79 = scmp.eq.s32.totalorder %s20, 1
      %p80 = por %p78, %p79
      %p81 = scmp.ne.s32.totalorder %s72, %s73
      %p82 = scmp.eq.s32.totalorder %s20, 0
      %p83 = por %p81, %p82
      %p84 = scmp.ne.s32.totalorder %s72, %s73
      %p85 = scmp.eq.s32.totalorder %s21, 1
      %p86 = por %p84, %p85
      %p88 = scmp.ne.s32.totalorder %s73, %s87
      %p89 = scmp.eq.s32.totalorder %s21, 0
      %p90 = por %p88, %p89
      %s91 = ssub.s32 %s15, %s22
      %p92 = scmp.eq.s32.totalorder %s91, 0
      %s94 = sadd.s32 %s93, 1
      %s95 = scalar_select %p92, %s93, %s94
      %p98 = pneg %p92
      %p99 = scmp.eq.s32.totalorder %s15, 1
      %p100 = por %p98, %p99
      %p101 = scmp.ne.s32.totalorder %s93, %s96
      %p102 = scmp.eq.s32.totalorder %s15, 0
      %p103 = por %p101, %p102
      %p104 = scmp.ne.s32.totalorder %s93, %s96
      %p105 = scmp.eq.s32.totalorder %s20, 1
      %p106 = por %p104, %p105
      %p107 = scmp.ne.s32.totalorder %s96, %s97
      %p108 = scmp.eq.s32.totalorder %s20, 0
      %p109 = por %p107, %p108
      %p110 = scmp.ne.s32.totalorder %s96, %s97
      %p111 = scmp.eq.s32.totalorder %s21, 1
      %p112 = por %p110, %p111
      %p114 = scmp.ne.s32.totalorder %s97, %s113
      %p115 = scmp.eq.s32.totalorder %s21, 0
      %p116 = por %p114, %p115
      %p117 = scmp.le.s32.totalorder 1, %s15
      %p118 = scmp.lt.s32.totalorder %s15, 3
      %p119 = pnand %p117, %p118
      %p120 = pneg %p119
      // Predicated region
      $region9: #{tpu_custom_call.1} parent=5 // pred_check
        _
      $region10: #{tpu_custom_call.1} parent=5 // pred_check_branch
        %122 = sbr.rel (%p119) target = $region12
      $region11: #{tpu_custom_call.1} parent=5 // pred_region
        %s123 = ssub.s32 %s15, 1
        // Predicated region
        $region13: #{tpu_custom_call.1} parent=11 // pred_check
          %p124 = pneg %p62
        $region14: #{tpu_custom_call.1} parent=11 // pred_check_branch
          %126 = sbr.rel (%p124) target = $region16
        $region15: #{tpu_custom_call.1} parent=11 // pred_region
          _
        $region16: #{tpu_custom_call.1} parent=11 // pred_fallthru
          _
        // Predicated region
        $region17: #{tpu_custom_call.1} parent=11 // pred_check
          %p127 = pneg %p83
        $region18: #{tpu_custom_call.1} parent=11 // pred_check_branch
          %129 = sbr.rel (%p127) target = $region20
        $region19: #{tpu_custom_call.1} parent=11 // pred_region
          _
        $region20: #{tpu_custom_call.1} parent=11 // pred_fallthru
          _
      $region12: #{tpu_custom_call.1} parent=5 // pred_fallthru
        _
      %p130 = scmp.lt.s32.totalorder %s15, 2
      // Predicated region
      $region21: #{tpu_custom_call.1} parent=5 // pred_check
        %p131 = pneg %p130
      $region22: #{tpu_custom_call.1} parent=5 // pred_check_branch
        %133 = sbr.rel (%p131) target = $region24
      $region23: #{tpu_custom_call.1} parent=5 // pred_region
        // Predicated region
        $region25: #{tpu_custom_call.1} parent=23 // pred_check
          %p134 = pneg %p35
        $region26: #{tpu_custom_call.1} parent=23 // pred_check_branch
          %136 = sbr.rel (%p134) target = $region28
        $region27: #{tpu_custom_call.1} parent=23 // pred_region
          %s137 = sand.u32 %s25, 1
          %s138 = scalar_lea.sflag [#allocation3], %s137
          %s139 = sand.u32 %s25, 1
          %s140 = smul.addr %s139, 64
          %s141 = scalar_lea.vmem [#allocation2], %s140
          %143 = vsyncadd %s138, 0
          %s144 = smul.addr %s15, 8
          %s145 = smul.addr %s144, 8
          %s146 = scalar_lea.hbm %s0, %s145
          %s147 = sshll.u32 %s146, 4
          %s148 = int_to_ptr.hbm [resolvable:$true] %s147
          %s149 = sshll.u32 %s141, 4
          %s150 = int_to_ptr.vmem [resolvable:$true] %s149
          %155 = dma.hbm_to_vmem [thread:$0]  %s148, 1024, %s150, %s138, 256, 256, 16
        $region28: #{tpu_custom_call.1} parent=23 // pred_fallthru
          _
      $region24: #{tpu_custom_call.1} parent=5 // pred_fallthru
        _
      %p156 = scmp.le.s32.totalorder 1, %s15
      %p157 = scmp.lt.s32.totalorder %s15, 3
      %p158 = pnand %p156, %p157
      %p159 = pneg %p158
      // Predicated region
      $region29: #{tpu_custom_call.1} parent=5 // pred_check
        _
      $region30: #{tpu_custom_call.1} parent=5 // pred_check_branch
        %161 = sbr.rel (%p158) target = $region32
      $region31: #{tpu_custom_call.1} parent=5 // pred_region
        %s162 = ssub.s32 %s15, 1
        %s163 = sand.u32 %s28, 1
        %s164 = scalar_lea.sflag [#allocation3], %s163
        %s165 = sand.u32 %s28, 1
        %s166 = smul.addr %s165, 64
        %s167 = scalar_lea.vmem [#allocation2], %s166
        // Predicated region
        $region33: #{tpu_custom_call.1} parent=31 // pred_check
          %p168 = pneg %p41
        $region34: #{tpu_custom_call.1} parent=31 // pred_check_branch
          %170 = sbr.rel (%p168) target = $region36
        $region35: #{tpu_custom_call.1} parent=31 // pred_region
          %172 = dma.done %s164, 1024
        $region36: #{tpu_custom_call.1} parent=31 // pred_fallthru
          _
        %s173 = sand.u32 %s28, 1
        %s174 = scalar_lea.sflag [#allocation3], %s173
        %s175 = sand.u32 %s28, 1
        %s176 = smul.addr %s175, 64
        %s177 = scalar_lea.vmem [#allocation2], %s176
        %p178 = pneg %p41
        %p179 = pneg %p38
        %p180 = pneg %p62
        %p181 = pneg %p59
        %p182 = pneg %p83
        %p183 = pneg %p80
        %p184 = pneg %p109
        %p185 = pneg %p106
        %s186 = sand.u32 %s96, 1
        %s187 = scalar_lea.sflag [#allocation4], %s186
        %s188 = sand.u32 %s96, 1
        %s189 = smul.addr %s188, 64
        %s190 = scalar_lea.vmem [#allocation5], %s189
        %v191 = vld [vmem:[%s167] sm:$0xff]
        %v192 = vld [vmem:[%s167 + $0x8] sm:$0xff]
        %v193 = vld [vmem:[%s167 + $0x10] sm:$0xff]
        %v194 = vld [vmem:[%s167 + $0x18] sm:$0xff]
        %v195 = vld [vmem:[%s167 + $0x20] sm:$0xff]
        %v196 = vld [vmem:[%s167 + $0x28] sm:$0xff]
        %v197 = vld [vmem:[%s167 + $0x30] sm:$0xff]
        %v198 = vld [vmem:[%s167 + $0x38] sm:$0xff]
        %v199 = vadd.f32 %v191, %v192
        %200 = vadd.xlane.f32.xlu0 %v199
        %v201 = vpop.xlane.xlu0 %200
        %v202 = vadd.f32 %v193, %v194
        %203 = vadd.xlane.f32.xlu0 %v202
        %v204 = vpop.xlane.xlu0 %203
        %v205 = vadd.f32 %v195, %v196
        %206 = vadd.xlane.f32.xlu0 %v205
        %v207 = vpop.xlane.xlu0 %206
        %v208 = vadd.f32 %v197, %v198
        %209 = vadd.xlane.f32.xlu0 %v208
        %v210 = vpop.xlane.xlu0 %209
        %v211 = vmul.f32 %v201, 0.00390625
        %v212 = vmul.f32 %v204, 0.00390625
        %v213 = vmul.f32 %v207, 0.00390625
        %v214 = vmul.f32 %v210, 0.00390625
        %v215 = vld [vmem:[%s1] sm:$0xff]
        %v216 = vld [vmem:[%s1 + $0x8] sm:$0xff]
        %v217 = vld [vmem:[%s1 + $0x10] sm:$0xff]
        %v218 = vld [vmem:[%s1 + $0x18] sm:$0xff]
        %v223 = vlaneseq
        %v224 = vand.u32 %v223, 127
        %v225 = vperm.slane %v211, %v224
        %v226 = vadd.s32 %v224, 4294967288
        %v227 = vperm.slane %v212, %v226
        %vm228 = vcmask 130112
        %v229 = vsel %vm228, %v227, %v225
        %v230 = vadd.s32 %v224, 4294967280
        %v231 = vperm.slane %v213, %v230
        %vm232 = vcmask 195712
        %v233 = vsel %vm232, %v231, %v229
        %v234 = vadd.s32 %v224, 4294967272
        %v235 = vperm.slane %v214, %v234
        %vm236 = vcmask 261312
        %v237 = vsel %vm236, %v235, %v233
        %vm238 = vcmask 261120
        %v239 = vsel %vm238, %v237, 0
        %241 = vmatpush.msra.mxu0 0.0
        %242 = vmatpush.msra.mxu0 0.0
        %243 = vmatpush.msra.mxu0 0.0
        %244 = vmatpush.msra.mxu0 0.0
        %245 = vmatpush.msra.mxu0 0.0
        %246 = vmatpush.msra.mxu0 0.0
        %247 = vmatpush.msra.mxu0 0.0
        %248 = vmatpush.msra.mxu0 0.0
        %249 = vmatpush.msra.mxu0 0.0
        %250 = vmatpush.msra.mxu0 0.0
        %251 = vmatpush.msra.mxu0 0.0
        %252 = vmatpush.msra.mxu0 0.0
        %253 = vmatpush.msra.mxu0 %v218
        %254 = vmatpush.msra.mxu0 %v217
        %255 = vmatpush.msra.mxu0 %v216
        %256 = vmatpush.msra.mxu0 %v215
        %257 = vmatmul.f32.gmra.mxu0 %v239
        %v258 = vpop.f32.mrf.mxu0
        %v259 = vadd.f32 0.0, %v258
        %260 = vdwg.mxu0
        %v261 = vxor.u32 %v259, 2147483648
        %v262 = vmul.f32 %v261, 1.442695
        %v263 = vpow.pop %v262
        %v264 = vadd.f32 %v263, 1.0
        %v265 = vrcp.pop %v264
        %v266 = vmul.f32 %v264, %v265
        %v267 = vsub.f32 1.0, %v266
        %v268 = vmul.f32 %v265, %v267
        %v269 = vadd.f32 %v265, %v268
        %vm270 = vweird.f32 %v264
        %vm271 = vweird.f32 %v265
        %vm272 = vmor %vm270, %vm271
        %v273 = vsel %vm272, %v265, %v269
        %v274 = vand.u32 2147483647, %v264
        %vm275 = vcmp.eq.f32.partialorder %v274, 8.507059e+37
        %v276 = vand.u32 %v264, 2147483648
        %v277 = vor.u32 1.1754944e-38, %v276
        %v278 = vsel %vm275, %v277, %v273
        %v279 = vmul.f32 1.0, %v278
        %v280 = vmul.f32 %v259, %v279
        %v281 = vld [vmem:[%s2] sm:$0x3]
        %vm282 = vcmask 15360
        %v284 = vsel %vm282, %v280, 0
        %vm286 = vcmask 1041408
        %v288 = vsel %vm286, %v281, 0
        %290 = vmatpush.msra.mxu0 0.0
        %291 = vmatpush.msra.mxu0 0.0
        %292 = vmatpush.msra.mxu0 0.0
        %293 = vmatpush.msra.mxu0 0.0
        %294 = vmatpush.msra.mxu0 0.0
        %295 = vmatpush.msra.mxu0 0.0
        %296 = vmatpush.msra.mxu0 0.0
        %297 = vmatpush.msra.mxu0 0.0
        %298 = vmatpush.msra.mxu0 0.0
        %299 = vmatpush.msra.mxu0 0.0
        %300 = vmatpush.msra.mxu0 0.0
        %301 = vmatpush.msra.mxu0 0.0
        %302 = vmatpush.msra.mxu0 0.0
        %303 = vmatpush.msra.mxu0 0.0
        %304 = vmatpush.msra.mxu0 0.0
        %305 = vmatpush.msra.mxu0 %v288
        %306 = vmatmul.f32.gmra.mxu0 %v284
        %v307 = vpop.f32.mrf.mxu0
        %v308 = vadd.f32 0.0, %v307
        %309 = vdwg.mxu0
        %v310 = vxor.u32 %v308, 2147483648
        %v311 = vmul.f32 %v310, 1.442695
        %v312 = vpow.pop %v311
        %v313 = vadd.f32 %v312, 1.0
        %v314 = vrcp.pop %v313
        %v315 = vmul.f32 %v313, %v314
        %v316 = vsub.f32 1.0, %v315
        %v317 = vmul.f32 %v314, %v316
        %v318 = vadd.f32 %v314, %v317
        %vm319 = vweird.f32 %v313
        %vm320 = vweird.f32 %v314
        %vm321 = vmor %vm319, %vm320
        %v322 = vsel %vm321, %v314, %v318
        %v323 = vand.u32 2147483647, %v313
        %vm324 = vcmp.eq.f32.partialorder %v323, 8.507059e+37
        %v325 = vand.u32 %v313, 2147483648
        %v326 = vor.u32 1.1754944e-38, %v325
        %v327 = vsel %vm324, %v326, %v322
        %v328 = vmul.f32 1.0, %v327
        %v329 = vperm.slane %v328, 0
        %v330 = vlaneseq
        %v331 = vshrl.u32 %v330, 7
        %333 = vset.pattern.permute.xlu0 %v331
        %334 = vperm.xlu0 %333, %v329
        %v335 = vpop.permute.xlu0 %334
        %v336 = vlaneseq
        %v337 = vshrl.u32 %v336, 7
        %v338 = vadd.s32 %v337, 8
        %339 = vset.pattern.permute.xlu0 %v338
        %340 = vperm.xlu0 %339, %v329
        %v341 = vpop.permute.xlu0 %340
        %v342 = vlaneseq
        %v343 = vshrl.u32 %v342, 7
        %v344 = vadd.s32 %v343, 16
        %345 = vset.pattern.permute.xlu0 %v344
        %346 = vperm.xlu0 %345, %v329
        %v347 = vpop.permute.xlu0 %346
        %v348 = vlaneseq
        %v349 = vshrl.u32 %v348, 7
        %v350 = vadd.s32 %v349, 24
        %351 = vset.pattern.permute.xlu0 %v350
        %352 = vperm.xlu0 %351, %v329
        %v353 = vpop.permute.xlu0 %352
        %v354 = vmul.f32 %v191, %v335
        %v355 = vmul.f32 %v192, %v335
        %v356 = vmul.f32 %v193, %v341
        %v357 = vmul.f32 %v194, %v341
        %v358 = vmul.f32 %v195, %v347
        %v359 = vmul.f32 %v196, %v347
        %v360 = vmul.f32 %v197, %v353
        %v361 = vmul.f32 %v198, %v353
        %362 = vst [vmem:[%s190] sm:$0xff] %v354
        %363 = vst [vmem:[%s190 + $0x8] sm:$0xff] %v355
        %364 = vst [vmem:[%s190 + $0x10] sm:$0xff] %v356
        %365 = vst [vmem:[%s190 + $0x18] sm:$0xff] %v357
        %366 = vst [vmem:[%s190 + $0x20] sm:$0xff] %v358
        %367 = vst [vmem:[%s190 + $0x28] sm:$0xff] %v359
        %368 = vst [vmem:[%s190 + $0x30] sm:$0xff] %v360
        %369 = vst [vmem:[%s190 + $0x38] sm:$0xff] %v361
        %s370 = sand.u32 %s96, 1
        %s371 = scalar_lea.sflag [#allocation4], %s370
        %s372 = sand.u32 %s96, 1
        %s373 = smul.addr %s372, 64
        %s374 = scalar_lea.vmem [#allocation5], %s373
        // Predicated region
        $region37: #{tpu_custom_call.1} parent=31 // pred_check
          %p375 = pneg %p106
        $region38: #{tpu_custom_call.1} parent=31 // pred_check_branch
          %377 = sbr.rel (%p375) target = $region40
        $region39: #{tpu_custom_call.1} parent=31 // pred_region
          %379 = vsyncadd %s371, 0
          %s380 = smul.addr %s20, 8
          %s381 = smul.addr %s380, 8
          %s382 = scalar_lea.hbm %s3, %s381
          %s383 = sshll.u32 %s374, 4
          %s384 = int_to_ptr.vmem [resolvable:$true] %s383
          %s385 = sshll.u32 %s382, 4
          %s386 = int_to_ptr.hbm [resolvable:$true] %s385
          %391 = dma.vmem_to_hbm [thread:$0]  %s384, 1024, %s386, %s371, 256, 256, 16
        $region40: #{tpu_custom_call.1} parent=31 // pred_fallthru
          _
      $region32: #{tpu_custom_call.1} parent=5 // pred_fallthru
        _
      %p392 = scmp.le.s32.totalorder 2, %s15
      // Predicated region
      $region41: #{tpu_custom_call.1} parent=5 // pred_check
        %p393 = pneg %p392
      $region42: #{tpu_custom_call.1} parent=5 // pred_check_branch
        %395 = sbr.rel (%p393) target = $region44
      $region43: #{tpu_custom_call.1} parent=5 // pred_region
        %s396 = ssub.s32 %s15, 2
        // Predicated region
        $region45: #{tpu_custom_call.1} parent=43 // pred_check
          %p397 = pneg %p112
        $region46: #{tpu_custom_call.1} parent=43 // pred_check_branch
          %399 = sbr.rel (%p397) target = $region48
        $region47: #{tpu_custom_call.1} parent=43 // pred_region
          %s400 = sand.u32 %s97, 1
          %s401 = scalar_lea.sflag [#allocation4], %s400
          %s402 = sand.u32 %s97, 1
          %s403 = smul.addr %s402, 64
          %s404 = scalar_lea.vmem [#allocation5], %s403
          %406 = dma.done %s401, 1024
        $region48: #{tpu_custom_call.1} parent=43 // pred_fallthru
          _
      $region44: #{tpu_custom_call.1} parent=5 // pred_fallthru
        _
    $region6: #{tpu_custom_call.1} parent=1 // loop_footer
      %s19 = sadd.s32 1, %s15
    $region7: #{tpu_custom_call.1} parent=1 // loop_footer_branch
      %14 = sbr.rel target = $region3
    $region8: #{tpu_custom_call.1} parent=1 // loop_exit
      _
    %407 = vsyncpa [#allocation3], 1
    %s408 = scalar_lea.sflag [#allocation3], 1
    %409 = vsyncpa %s408, 1
    %410 = vsyncpa [#allocation4], 1
    %s411 = scalar_lea.sflag [#allocation4], 1
    %412 = vsyncpa %s411, 1

</llo_original>
